<compile_context>
chip_gen: v6e
topology: v6e:2x2x1
jax: 0.10.0
libtpu: 0.0.40
codegen_flags: <defaults>
</compile_context>

<pallas_src>
import functools

import jax
import jax.numpy as jnp
from jax import lax
from jax.experimental import pallas as pl
from jax.experimental.pallas import tpu as pltpu


def _eirnn_kernel(x_ref, noise_ref, win_ref, wrec_ref, b_ref, h0_ref,
                  out_ref, *, alpha, T, B, matmul_dtype):
    """Whole recurrence in one kernel invocation.

    x_ref:     (T*B, n_in)  time-flattened inputs
    noise_ref: (T*B, Hp)    pre-sampled, pre-scaled recurrent noise (lane-padded)
    win_ref:   (n_in, Hp)   input weights (lane-padded with zeros)
    wrec_ref:  (Hp, Hp)     Dale's-law-constrained effective recurrent weights (zero-padded)
    b_ref:     (1, Hp)      bias (zero-padded)
    h0_ref:    (B, Hp)      initial hidden state (zero-padded)
    out_ref:   (T*B, Hp)    state collector; also holds the precomputed drive until each
                            step overwrites its own row-block with h_{t+1}
    """
    # Prologue: one batched MXU matmul for the non-recurrent drive of every step,
    # written directly into the output block (no separate drive scratch).
    x = x_ref[...].astype(matmul_dtype)
    win = win_ref[...].astype(matmul_dtype)
    out_ref[...] = (
        jnp.dot(x, win, preferred_element_type=jnp.float32)
        + b_ref[...]            # bias folded in once, outside the recurrence
        + noise_ref[...]
    )

    wrec = wrec_ref[...].astype(matmul_dtype)
    one_minus_alpha = jnp.float32(1.0 - alpha)
    alpha_f = jnp.float32(alpha)

    def step(t, h):
        row = t * B
        if B % 8 == 0:
            row = pl.multiple_of(row, 8)          # aligned sublane-slice hint
        r = jnp.maximum(h, 0.0)                   # ReLU firing rates (f32 carry)
        drive = out_ref[pl.ds(row, B), :]         # read this step's drive in place
        pre = (jnp.dot(r.astype(matmul_dtype), wrec,
                       preferred_element_type=jnp.float32)
               + drive)
        h_new = one_minus_alpha * h + alpha_f * pre
        out_ref[pl.ds(row, B), :] = h_new         # overwrite drive with the new state
        return h_new

    unroll = T if T <= 8 else 8                   # bounded partial unroll for long T
    lax.fori_loop(0, T, step, h0_ref[...], unroll=unroll)


def eirnn_forward(inputs, init_state, w_in, w_rec_eff, bias, noise, alpha,
                  matmul_dtype=jnp.float32):
    """Run the EI-RNN recurrence over all time steps with one Pallas kernel.

    inputs:     (T, B, n_input) float32
    init_state: (B, H)          float32
    w_in:       (n_input, H)
    w_rec_eff:  (H, H)   Dale's-law-constrained effective recurrent weights
    bias:       (1, H)
    noise:      (T, B, H)  pre-sampled recurrent noise (already scaled)
    returns state_collector: (T, B, H)
    """
    T, B, n_in = inputs.shape
    H = init_state.shape[1]

    # Lane-dense layout: zero-pad the hidden dim to a multiple of 128 so every store
    # is an unmasked full-lane vst.  Zero padding keeps the padded lanes identically
    # zero through the recurrence (zero drive, zero recurrent contribution).
    Hp = ((H + 127) // 128) * 128
    pad = Hp - H
    if pad:
        w_in_p = jnp.pad(w_in, ((0, 0), (0, pad)))
        w_rec_p = jnp.pad(w_rec_eff, ((0, pad), (0, pad)))
        bias_p = jnp.pad(bias, ((0, 0), (0, pad)))
        noise_p = jnp.pad(noise, ((0, 0), (0, 0), (0, pad)))
        h0_p = jnp.pad(init_state, ((0, 0), (0, pad)))
    else:
        w_in_p, w_rec_p, bias_p, noise_p, h0_p = w_in, w_rec_eff, bias, noise, init_state

    # Free reshapes outside the kernel: time-flattened, lane-friendly 2-D views.
    x2 = inputs.reshape(T * B, n_in)
    noise2 = noise_p.reshape(T * B, Hp)

    # VMEM residency estimate (everything lives in VMEM for the whole call).
    est_bytes = 4 * (T * B * n_in + 2 * T * B * Hp + n_in * Hp + Hp * Hp + Hp + B * Hp)
    if 2 * est_bytes > 96 * 1024 * 1024:
        # Whole-problem-resident design no longer fits (v7x has 64 MiB physical VMEM):
        # tile T with a grid (output BlockSpec indexed by t-block, h carried in scratch
        # across an "arbitrary" t axis) before raising limits further.
        raise ValueError(
            "Problem too large for single-resident EI-RNN kernel; tile the time axis."
        )
    cp_kwargs = {}
    if 2 * est_bytes > 32 * 1024 * 1024:          # above the default scoped VMEM limit
        cp_kwargs = dict(compiler_params=pltpu.CompilerParams(
            vmem_limit_bytes=int(min(2 * est_bytes, 100 * 1024 * 1024))))

    kernel = functools.partial(_eirnn_kernel, alpha=float(alpha), T=T, B=B,
                               matmul_dtype=matmul_dtype)
    vmem = pl.BlockSpec(memory_space=pltpu.MemorySpace.VMEM)

    out_flat = pl.pallas_call(
        kernel,
        out_shape=jax.ShapeDtypeStruct((T * B, Hp), jnp.float32),
        in_specs=[vmem, vmem, vmem, vmem, vmem, vmem],
        out_specs=vmem,
        **cp_kwargs,
    )(x2, noise2, w_in_p, w_rec_p, bias_p, h0_p)

    return out_flat.reshape(T, B, Hp)[..., :H]


def reference_forward(inputs, init_state, w_in, w_rec_eff, bias, noise, alpha):
    """Plain-JAX reference of the same recurrence (for correctness check)."""
    def step(h, xs):
        x_t, n_t = xs
        r = jnp.maximum(h, 0.0)
        pre = x_t @ w_in + r @ w_rec_eff + bias + n_t
        h_new = (1.0 - alpha) * h + alpha * pre
        return h_new, h_new

    _, states = jax.lax.scan(step, init_state, (inputs, noise))
    return states


if __name__ == "__main__":
    # Hyperparameters consistent with Network.__init__
    hp = dict(n_input=8, n_rnn=24, n_md=8, alpha=0.2, sigma_rec=0.05, dropout=0.0)
    n_input = hp["n_input"]
    H = hp["n_rnn"] + hp["n_md"]       # hidden_size = n_rnn + n_md = 32
    alpha = hp["alpha"]
    sigma_rec = hp["sigma_rec"]

    T, B = 8, 8                         # small seq length / batch (B >= 128 is the real lever)

    key = jax.random.PRNGKey(0)
    k_in, k_rec, k_b, k_x, k_h0, k_noise = jax.random.split(key, 6)

    # Deterministic parameter init (synthetic; no checkpoint load).
    w_in = jax.random.normal(k_in, (n_input, H), jnp.float32) / jnp.sqrt(n_input)
    w_rec_raw = jax.random.normal(k_rec, (H, H), jnp.float32) / jnp.sqrt(H)
    bias = 0.01 * jax.random.normal(k_b, (1, H), jnp.float32)

    # Dale's-law EI sign mask: n_rnn excitatory (+1), n_md inhibitory (-1).
    ei_signs = jnp.concatenate(
        [jnp.ones((hp["n_rnn"],), jnp.float32), -jnp.ones((hp["n_md"],), jnp.float32)]
    )
    w_rec_eff = jnp.abs(w_rec_raw) * ei_signs[:, None]   # sign per presynaptic unit

    inputs = jax.random.normal(k_x, (T, B, n_input), jnp.float32)
    init_state = 0.1 * jax.random.normal(k_h0, (B, H), jnp.float32)

    # Pre-sampled, deterministically seeded recurrent noise
    # (matches sqrt(2*alpha)*sigma_rec*randn used in EIRNN implementations).
    noise = (jnp.sqrt(2.0 * alpha) * sigma_rec
             * jax.random.normal(k_noise, (T, B, H), jnp.float32))

    ref = reference_forward(inputs, init_state, w_in, w_rec_eff, bias, noise, alpha)

    # 1) f32 matmul operands: bitwise-faithful path, strict tolerance.
    out = eirnn_forward(inputs, init_state, w_in, w_rec_eff, bias, noise, alpha)
    out = jax.block_until_ready(out)
    assert out.shape == (T, B, H)
    assert jnp.allclose(out, ref, atol=1e-4, rtol=1e-4), "f32 mismatch vs JAX reference"

    # 2) bf16 matmul operands (v6e/v7x MXU-native rate), f32 accumulation & carry.
    out_bf16 = eirnn_forward(inputs, init_state, w_in, w_rec_eff, bias, noise, alpha,
                             matmul_dtype=jnp.bfloat16)
    out_bf16 = jax.block_until_ready(out_bf16)
    assert out_bf16.shape == (T, B, H)
    assert jnp.allclose(out_bf16, ref, atol=5e-2, rtol=5e-2), "bf16 mismatch vs JAX reference"

    print("KERNEL_OK")
</pallas_src>

<mosaic_0001>
module attributes {stable_mosaic.version = 11 : i64} {
  func.func @_eirnn_kernel(%arg0: memref<64x8xf32, #tpu.memory_space<vmem>>, %arg1: memref<64x128xf32, #tpu.memory_space<vmem>>, %arg2: memref<8x128xf32, #tpu.memory_space<vmem>>, %arg3: memref<128x128xf32, #tpu.memory_space<vmem>>, %arg4: memref<1x128xf32, #tpu.memory_space<vmem>>, %arg5: memref<8x128xf32, #tpu.memory_space<vmem>>, %arg6: memref<64x128xf32, #tpu.memory_space<vmem>>) attributes {dimension_semantics = [], scalar_prefetch = 0 : i64, scratch_operands = 0 : i64, tpu.core_type = #tpu.core_type<tc>} {
    %c0 = arith.constant 0 : index
    %c0_0 = arith.constant 0 : index
    %0 = vector.load %arg0[%c0, %c0_0] : memref<64x8xf32, #tpu.memory_space<vmem>>, vector<64x8xf32>
    %c0_1 = arith.constant 0 : index
    %c0_2 = arith.constant 0 : index
    %1 = vector.load %arg2[%c0_1, %c0_2] : memref<8x128xf32, #tpu.memory_space<vmem>>, vector<8x128xf32>
    %cst = arith.constant dense<0.000000e+00> : vector<64x128xf32>
    %2 = tpu.matmul %0, %1, %cst {dimension_numbers = #tpu.dot_dimension_numbers<[1], [0], [0], [1], [0, 0, 1, 1], [], []>} : vector<64x8xf32>, vector<8x128xf32>, vector<64x128xf32> -> vector<64x128xf32>
    %c0_3 = arith.constant 0 : index
    %c0_4 = arith.constant 0 : index
    %3 = vector.load %arg4[%c0_3, %c0_4] : memref<1x128xf32, #tpu.memory_space<vmem>>, vector<1x128xf32>
    %4 = vector.broadcast %3 : vector<1x128xf32> to vector<64x128xf32>
    %5 = arith.addf %2, %4 : vector<64x128xf32>
    %c0_5 = arith.constant 0 : index
    %c0_6 = arith.constant 0 : index
    %6 = vector.load %arg1[%c0_5, %c0_6] : memref<64x128xf32, #tpu.memory_space<vmem>>, vector<64x128xf32>
    %7 = arith.addf %5, %6 : vector<64x128xf32>
    %c0_7 = arith.constant 0 : index
    %c0_8 = arith.constant 0 : index
    %8 = vector.load %arg6[%c0_7, %c0_8] : memref<64x128xf32, #tpu.memory_space<vmem>>, vector<64x128xf32>
    tpu.vector_store %arg6[%c0_7, %c0_8], %7 {strides = array<i32>} : memref<64x128xf32, #tpu.memory_space<vmem>>, vector<64x128xf32>,
    %c0_9 = arith.constant 0 : index
    %c0_10 = arith.constant 0 : index
    %9 = vector.load %arg3[%c0_9, %c0_10] : memref<128x128xf32, #tpu.memory_space<vmem>>, vector<128x128xf32>
    %c0_11 = arith.constant 0 : index
    %c0_12 = arith.constant 0 : index
    %10 = vector.load %arg5[%c0_11, %c0_12] : memref<8x128xf32, #tpu.memory_space<vmem>>, vector<8x128xf32>
    %cst_13 = arith.constant 8.000000e-01 : f32
    %cst_14 = arith.constant 2.000000e-01 : f32
    %c0_i32 = arith.constant 0 : i32
    %c8_i32 = arith.constant 8 : i32
    %11 = arith.muli %c0_i32, %c8_i32 : i32
    %12 = tpu.assume_multiple %11, 8 : i32
    %cst_15 = arith.constant 0.000000e+00 : f32
    %13 = vector.broadcast %cst_15 : f32 to vector<8x128xf32>
    %14 = arith.maximumf %10, %13 : vector<8x128xf32>
    %15 = arith.index_cast %12 : i32 to index
    %c0_16 = arith.constant 0 : index
    %16 = vector.load %arg6[%15, %c0_16] : memref<64x128xf32, #tpu.memory_space<vmem>>, vector<8x128xf32>
    %cst_17 = arith.constant dense<0.000000e+00> : vector<8x128xf32>
    %17 = tpu.matmul %14, %9, %cst_17 {dimension_numbers = #tpu.dot_dimension_numbers<[1], [0], [0], [1], [0, 0, 1, 1], [], []>} : vector<8x128xf32>, vector<128x128xf32>, vector<8x128xf32> -> vector<8x128xf32>
    %18 = arith.addf %17, %16 : vector<8x128xf32>
    %19 = vector.broadcast %cst_13 : f32 to vector<8x128xf32>
    %20 = arith.mulf %19, %10 : vector<8x128xf32>
    %21 = vector.broadcast %cst_14 : f32 to vector<8x128xf32>
    %22 = arith.mulf %21, %18 : vector<8x128xf32>
    %23 = arith.addf %20, %22 : vector<8x128xf32>
    %24 = arith.index_cast %12 : i32 to index
    %c0_18 = arith.constant 0 : index
    %25 = vector.load %arg6[%24, %c0_18] : memref<64x128xf32, #tpu.memory_space<vmem>>, vector<8x128xf32>
    tpu.vector_store %arg6[%24, %c0_18], %23 {strides = array<i32>} : memref<64x128xf32, #tpu.memory_space<vmem>>, vector<8x128xf32>,
    %c1_i32 = arith.constant 1 : i32
    %c8_i32_19 = arith.constant 8 : i32
    %26 = arith.muli %c1_i32, %c8_i32_19 : i32
    %27 = tpu.assume_multiple %26, 8 : i32
    %cst_20 = arith.constant 0.000000e+00 : f32
    %28 = vector.broadcast %cst_20 : f32 to vector<8x128xf32>
    %29 = arith.maximumf %23, %28 : vector<8x128xf32>
    %30 = arith.index_cast %27 : i32 to index
    %c0_21 = arith.constant 0 : index
    %31 = vector.load %arg6[%30, %c0_21] : memref<64x128xf32, #tpu.memory_space<vmem>>, vector<8x128xf32>
    %cst_22 = arith.constant dense<0.000000e+00> : vector<8x128xf32>
    %32 = tpu.matmul %29, %9, %cst_22 {dimension_numbers = #tpu.dot_dimension_numbers<[1], [0], [0], [1], [0, 0, 1, 1], [], []>} : vector<8x128xf32>, vector<128x128xf32>, vector<8x128xf32> -> vector<8x128xf32>
    %33 = arith.addf %32, %31 : vector<8x128xf32>
    %34 = vector.broadcast %cst_13 : f32 to vector<8x128xf32>
    %35 = arith.mulf %34, %23 : vector<8x128xf32>
    %36 = vector.broadcast %cst_14 : f32 to vector<8x128xf32>
    %37 = arith.mulf %36, %33 : vector<8x128xf32>
    %38 = arith.addf %35, %37 : vector<8x128xf32>
    %39 = arith.index_cast %27 : i32 to index
    %c0_23 = arith.constant 0 : index
    %40 = vector.load %arg6[%39, %c0_23] : memref<64x128xf32, #tpu.memory_space<vmem>>, vector<8x128xf32>
    tpu.vector_store %arg6[%39, %c0_23], %38 {strides = array<i32>} : memref<64x128xf32, #tpu.memory_space<vmem>>, vector<8x128xf32>,
    %c2_i32 = arith.constant 2 : i32
    %c8_i32_24 = arith.constant 8 : i32
    %41 = arith.muli %c2_i32, %c8_i32_24 : i32
    %42 = tpu.assume_multiple %41, 8 : i32
    %cst_25 = arith.constant 0.000000e+00 : f32
    %43 = vector.broadcast %cst_25 : f32 to vector<8x128xf32>
    %44 = arith.maximumf %38, %43 : vector<8x128xf32>
    %45 = arith.index_cast %42 : i32 to index
    %c0_26 = arith.constant 0 : index
    %46 = vector.load %arg6[%45, %c0_26] : memref<64x128xf32, #tpu.memory_space<vmem>>, vector<8x128xf32>
    %cst_27 = arith.constant dense<0.000000e+00> : vector<8x128xf32>
    %47 = tpu.matmul %44, %9, %cst_27 {dimension_numbers = #tpu.dot_dimension_numbers<[1], [0], [0], [1], [0, 0, 1, 1], [], []>} : vector<8x128xf32>, vector<128x128xf32>, vector<8x128xf32> -> vector<8x128xf32>
    %48 = arith.addf %47, %46 : vector<8x128xf32>
    %49 = vector.broadcast %cst_13 : f32 to vector<8x128xf32>
    %50 = arith.mulf %49, %38 : vector<8x128xf32>
    %51 = vector.broadcast %cst_14 : f32 to vector<8x128xf32>
    %52 = arith.mulf %51, %48 : vector<8x128xf32>
    %53 = arith.addf %50, %52 : vector<8x128xf32>
    %54 = arith.index_cast %42 : i32 to index
    %c0_28 = arith.constant 0 : index
    %55 = vector.load %arg6[%54, %c0_28] : memref<64x128xf32, #tpu.memory_space<vmem>>, vector<8x128xf32>
    tpu.vector_store %arg6[%54, %c0_28], %53 {strides = array<i32>} : memref<64x128xf32, #tpu.memory_space<vmem>>, vector<8x128xf32>,
    %c3_i32 = arith.constant 3 : i32
    %c8_i32_29 = arith.constant 8 : i32
    %56 = arith.muli %c3_i32, %c8_i32_29 : i32
    %57 = tpu.assume_multiple %56, 8 : i32
    %cst_30 = arith.constant 0.000000e+00 : f32
    %58 = vector.broadcast %cst_30 : f32 to vector<8x128xf32>
    %59 = arith.maximumf %53, %58 : vector<8x128xf32>
    %60 = arith.index_cast %57 : i32 to index
    %c0_31 = arith.constant 0 : index
    %61 = vector.load %arg6[%60, %c0_31] : memref<64x128xf32, #tpu.memory_space<vmem>>, vector<8x128xf32>
    %cst_32 = arith.constant dense<0.000000e+00> : vector<8x128xf32>
    %62 = tpu.matmul %59, %9, %cst_32 {dimension_numbers = #tpu.dot_dimension_numbers<[1], [0], [0], [1], [0, 0, 1, 1], [], []>} : vector<8x128xf32>, vector<128x128xf32>, vector<8x128xf32> -> vector<8x128xf32>
    %63 = arith.addf %62, %61 : vector<8x128xf32>
    %64 = vector.broadcast %cst_13 : f32 to vector<8x128xf32>
    %65 = arith.mulf %64, %53 : vector<8x128xf32>
    %66 = vector.broadcast %cst_14 : f32 to vector<8x128xf32>
    %67 = arith.mulf %66, %63 : vector<8x128xf32>
    %68 = arith.addf %65, %67 : vector<8x128xf32>
    %69 = arith.index_cast %57 : i32 to index
    %c0_33 = arith.constant 0 : index
    %70 = vector.load %arg6[%69, %c0_33] : memref<64x128xf32, #tpu.memory_space<vmem>>, vector<8x128xf32>
    tpu.vector_store %arg6[%69, %c0_33], %68 {strides = array<i32>} : memref<64x128xf32, #tpu.memory_space<vmem>>, vector<8x128xf32>,
    %c4_i32 = arith.constant 4 : i32
    %c8_i32_34 = arith.constant 8 : i32
    %71 = arith.muli %c4_i32, %c8_i32_34 : i32
    %72 = tpu.assume_multiple %71, 8 : i32
    %cst_35 = arith.constant 0.000000e+00 : f32
    %73 = vector.broadcast %cst_35 : f32 to vector<8x128xf32>
    %74 = arith.maximumf %68, %73 : vector<8x128xf32>
    %75 = arith.index_cast %72 : i32 to index
    %c0_36 = arith.constant 0 : index
    %76 = vector.load %arg6[%75, %c0_36] : memref<64x128xf32, #tpu.memory_space<vmem>>, vector<8x128xf32>
    %cst_37 = arith.constant dense<0.000000e+00> : vector<8x128xf32>
    %77 = tpu.matmul %74, %9, %cst_37 {dimension_numbers = #tpu.dot_dimension_numbers<[1], [0], [0], [1], [0, 0, 1, 1], [], []>} : vector<8x128xf32>, vector<128x128xf32>, vector<8x128xf32> -> vector<8x128xf32>
    %78 = arith.addf %77, %76 : vector<8x128xf32>
    %79 = vector.broadcast %cst_13 : f32 to vector<8x128xf32>
    %80 = arith.mulf %79, %68 : vector<8x128xf32>
    %81 = vector.broadcast %cst_14 : f32 to vector<8x128xf32>
    %82 = arith.mulf %81, %78 : vector<8x128xf32>
    %83 = arith.addf %80, %82 : vector<8x128xf32>
    %84 = arith.index_cast %72 : i32 to index
    %c0_38 = arith.constant 0 : index
    %85 = vector.load %arg6[%84, %c0_38] : memref<64x128xf32, #tpu.memory_space<vmem>>, vector<8x128xf32>
    tpu.vector_store %arg6[%84, %c0_38], %83 {strides = array<i32>} : memref<64x128xf32, #tpu.memory_space<vmem>>, vector<8x128xf32>,
    %c5_i32 = arith.constant 5 : i32
    %c8_i32_39 = arith.constant 8 : i32
    %86 = arith.muli %c5_i32, %c8_i32_39 : i32
    %87 = tpu.assume_multiple %86, 8 : i32
    %cst_40 = arith.constant 0.000000e+00 : f32
    %88 = vector.broadcast %cst_40 : f32 to vector<8x128xf32>
    %89 = arith.maximumf %83, %88 : vector<8x128xf32>
    %90 = arith.index_cast %87 : i32 to index
    %c0_41 = arith.constant 0 : index
    %91 = vector.load %arg6[%90, %c0_41] : memref<64x128xf32, #tpu.memory_space<vmem>>, vector<8x128xf32>
    %cst_42 = arith.constant dense<0.000000e+00> : vector<8x128xf32>
    %92 = tpu.matmul %89, %9, %cst_42 {dimension_numbers = #tpu.dot_dimension_numbers<[1], [0], [0], [1], [0, 0, 1, 1], [], []>} : vector<8x128xf32>, vector<128x128xf32>, vector<8x128xf32> -> vector<8x128xf32>
    %93 = arith.addf %92, %91 : vector<8x128xf32>
    %94 = vector.broadcast %cst_13 : f32 to vector<8x128xf32>
    %95 = arith.mulf %94, %83 : vector<8x128xf32>
    %96 = vector.broadcast %cst_14 : f32 to vector<8x128xf32>
    %97 = arith.mulf %96, %93 : vector<8x128xf32>
    %98 = arith.addf %95, %97 : vector<8x128xf32>
    %99 = arith.index_cast %87 : i32 to index
    %c0_43 = arith.constant 0 : index
    %100 = vector.load %arg6[%99, %c0_43] : memref<64x128xf32, #tpu.memory_space<vmem>>, vector<8x128xf32>
    tpu.vector_store %arg6[%99, %c0_43], %98 {strides = array<i32>} : memref<64x128xf32, #tpu.memory_space<vmem>>, vector<8x128xf32>,
    %c6_i32 = arith.constant 6 : i32
    %c8_i32_44 = arith.constant 8 : i32
    %101 = arith.muli %c6_i32, %c8_i32_44 : i32
    %102 = tpu.assume_multiple %101, 8 : i32
    %cst_45 = arith.constant 0.000000e+00 : f32
    %103 = vector.broadcast %cst_45 : f32 to vector<8x128xf32>
    %104 = arith.maximumf %98, %103 : vector<8x128xf32>
    %105 = arith.index_cast %102 : i32 to index
    %c0_46 = arith.constant 0 : index
    %106 = vector.load %arg6[%105, %c0_46] : memref<64x128xf32, #tpu.memory_space<vmem>>, vector<8x128xf32>
    %cst_47 = arith.constant dense<0.000000e+00> : vector<8x128xf32>
    %107 = tpu.matmul %104, %9, %cst_47 {dimension_numbers = #tpu.dot_dimension_numbers<[1], [0], [0], [1], [0, 0, 1, 1], [], []>} : vector<8x128xf32>, vector<128x128xf32>, vector<8x128xf32> -> vector<8x128xf32>
    %108 = arith.addf %107, %106 : vector<8x128xf32>
    %109 = vector.broadcast %cst_13 : f32 to vector<8x128xf32>
    %110 = arith.mulf %109, %98 : vector<8x128xf32>
    %111 = vector.broadcast %cst_14 : f32 to vector<8x128xf32>
    %112 = arith.mulf %111, %108 : vector<8x128xf32>
    %113 = arith.addf %110, %112 : vector<8x128xf32>
    %114 = arith.index_cast %102 : i32 to index
    %c0_48 = arith.constant 0 : index
    %115 = vector.load %arg6[%114, %c0_48] : memref<64x128xf32, #tpu.memory_space<vmem>>, vector<8x128xf32>
    tpu.vector_store %arg6[%114, %c0_48], %113 {strides = array<i32>} : memref<64x128xf32, #tpu.memory_space<vmem>>, vector<8x128xf32>,
    %c7_i32 = arith.constant 7 : i32
    %c8_i32_49 = arith.constant 8 : i32
    %116 = arith.muli %c7_i32, %c8_i32_49 : i32
    %117 = tpu.assume_multiple %116, 8 : i32
    %cst_50 = arith.constant 0.000000e+00 : f32
    %118 = vector.broadcast %cst_50 : f32 to vector<8x128xf32>
    %119 = arith.maximumf %113, %118 : vector<8x128xf32>
    %120 = arith.index_cast %117 : i32 to index
    %c0_51 = arith.constant 0 : index
    %121 = vector.load %arg6[%120, %c0_51] : memref<64x128xf32, #tpu.memory_space<vmem>>, vector<8x128xf32>
    %cst_52 = arith.constant dense<0.000000e+00> : vector<8x128xf32>
    %122 = tpu.matmul %119, %9, %cst_52 {dimension_numbers = #tpu.dot_dimension_numbers<[1], [0], [0], [1], [0, 0, 1, 1], [], []>} : vector<8x128xf32>, vector<128x128xf32>, vector<8x128xf32> -> vector<8x128xf32>
    %123 = arith.addf %122, %121 : vector<8x128xf32>
    %124 = vector.broadcast %cst_13 : f32 to vector<8x128xf32>
    %125 = arith.mulf %124, %113 : vector<8x128xf32>
    %126 = vector.broadcast %cst_14 : f32 to vector<8x128xf32>
    %127 = arith.mulf %126, %123 : vector<8x128xf32>
    %128 = arith.addf %125, %127 : vector<8x128xf32>
    %129 = arith.index_cast %117 : i32 to index
    %c0_53 = arith.constant 0 : index
    %130 = vector.load %arg6[%129, %c0_53] : memref<64x128xf32, #tpu.memory_space<vmem>>, vector<8x128xf32>
    tpu.vector_store %arg6[%129, %c0_53], %128 {strides = array<i32>} : memref<64x128xf32, #tpu.memory_space<vmem>>, vector<8x128xf32>,
    %c8_i32_54 = arith.constant 8 : i32
    return
  }
}

</mosaic_0001>

<llo_original>
// kernel: tpu_custom_call.1
$region0: #{tpu_custom_call.1}
  #allocation0 [shape = 'u32[]', space=smem, size = 0x4, offset = 0x4, fixed_abs, tag = 'smem constant byte address 0x4 - core index']
  #allocation1 [shape = 'u32[144,128]{1,0:T(1,128)}', space=vmem, size = 0x12000, scoped, tag = 'internal scratch']
  %s0 = inlined_call_operand.vmem [shape: f32[64,8], index: 0, kind: input, shape index: {}]
  %s1 = inlined_call_operand.vmem [shape: f32[64,128], index: 1, kind: input, shape index: {}]
  %s2 = inlined_call_operand.vmem [shape: f32[8,128], index: 2, kind: input, shape index: {}]
  %s3 = inlined_call_operand.hbm [shape: f32[128,128], index: 3, kind: input, shape index: {}]
  %s4 = inlined_call_operand.vmem [shape: f32[1,128], index: 4, kind: input, shape index: {}]
  %s5 = inlined_call_operand.vmem [shape: f32[8,128], index: 5, kind: input, shape index: {}]
  %s6 = inlined_call_operand.hbm [shape: f32[64,128], index: 6, kind: output, shape index: {}]
  %s7 = sld [smem:[#allocation0]]
  $region38: #{tpu_custom_call.1} parent=0
    _
  %s9 = ssub.s32 1, %s7
  %s10 = scalar_select 0, %s9, %s7
  $region1: #{tpu_custom_call.1} parent=0
    #allocation2 [shape = 'u8[65536]{0}', space=vmem, size = 0x10000, scoped, tag = 'input window, operand 3, single buffered']
    #allocation3 [shape = 's32[1]{0}', space=sflag, size = 0x4, scoped, tag = 'scoped memory for tpu_custom_call.1']
    #allocation4 [shape = 's32[1]{0}', space=sflag, size = 0x4, scoped, tag = 'scoped memory for tpu_custom_call.1']
    #allocation5 [shape = 'u8[32768]{0}', space=vmem, size = 0x8000, scoped, tag = 'output window, operand 0, single buffered']
    %11 = vsyncpa [#allocation3], 0
    %12 = vsyncpa [#allocation4], 0
    // Predicated region
    $region2: #{tpu_custom_call.1} parent=1 // pred_check
      _
    $region3: #{tpu_custom_call.1} parent=1 // pred_check_branch
      %14 = sbr.rel (0) target = $region5
    $region4: #{tpu_custom_call.1} parent=1 // pred_region
      _
    $region5: #{tpu_custom_call.1} parent=1 // pred_fallthru
      _
    // Predicated region
    $region6: #{tpu_custom_call.1} parent=1 // pred_check
      _
    $region7: #{tpu_custom_call.1} parent=1 // pred_check_branch
      %16 = sbr.rel (0) target = $region9
    $region8: #{tpu_custom_call.1} parent=1 // pred_region
      _
    $region9: #{tpu_custom_call.1} parent=1 // pred_fallthru
      _
    // Predicated region
    $region10: #{tpu_custom_call.1} parent=1 // pred_check
      _
    $region11: #{tpu_custom_call.1} parent=1 // pred_check_branch
      %18 = sbr.rel (0) target = $region13
    $region12: #{tpu_custom_call.1} parent=1 // pred_region
      _
    $region13: #{tpu_custom_call.1} parent=1 // pred_fallthru
      _
    // Predicated region
    $region14: #{tpu_custom_call.1} parent=1 // pred_check
      _
    $region15: #{tpu_custom_call.1} parent=1 // pred_check_branch
      %20 = sbr.rel (0) target = $region17
    $region16: #{tpu_custom_call.1} parent=1 // pred_region
      %s22 = ssub.s32 2048, 2048
      %23 = vsyncadd [#allocation3], %s22
      %s24 = sshll.u32 [#allocation2], 4
      %s25 = int_to_ptr.vmem [resolvable:$true] %s24
      %30 = dma.hbm_to_vmem [thread:$0]  %s3, 2048, %s25, [#allocation3], 128, 128, 8
    $region17: #{tpu_custom_call.1} parent=1 // pred_fallthru
      _
    // Predicated region
    $region18: #{tpu_custom_call.1} parent=1 // pred_check
      _
    $region19: #{tpu_custom_call.1} parent=1 // pred_check_branch
      %32 = sbr.rel (0) target = $region21
    $region20: #{tpu_custom_call.1} parent=1 // pred_region
      _
    $region21: #{tpu_custom_call.1} parent=1 // pred_fallthru
      _
    // Predicated region
    $region22: #{tpu_custom_call.1} parent=1 // pred_check
      _
    $region23: #{tpu_custom_call.1} parent=1 // pred_check_branch
      %34 = sbr.rel (0) target = $region25
    $region24: #{tpu_custom_call.1} parent=1 // pred_region
      _
    $region25: #{tpu_custom_call.1} parent=1 // pred_fallthru
      _
    // Predicated region
    $region26: #{tpu_custom_call.1} parent=1 // pred_check
      _
    $region27: #{tpu_custom_call.1} parent=1 // pred_check_branch
      %36 = sbr.rel (0) target = $region29
    $region28: #{tpu_custom_call.1} parent=1 // pred_region
      %37 = dma.done [#allocation3], 2048
    $region29: #{tpu_custom_call.1} parent=1 // pred_fallthru
      _
    %v38 = vld [vmem:[%s0] sm:$0xff]
    %v39 = vld [vmem:[%s0 + $0x8] sm:$0xff]
    %v40 = vld [vmem:[%s0 + $0x10] sm:$0xff]
    %v41 = vld [vmem:[%s0 + $0x18] sm:$0xff]
    %v42 = vld [vmem:[%s0 + $0x20] sm:$0xff]
    %v43 = vld [vmem:[%s0 + $0x28] sm:$0xff]
    %v44 = vld [vmem:[%s0 + $0x30] sm:$0xff]
    %v45 = vld [vmem:[%s0 + $0x38] sm:$0xff]
    %v46 = vld [vmem:[%s2] sm:$0xff]
    %v47 = vld [vmem:[%s4] sm:$0x1]
    %v49 = vlaneseq
    %v50 = vshrl.u32 %v49, 7
    %v51 = vsub.s32 0, %v50
    %v52 = vrot.slane %v47, %v51
    %vm54 = vcmask 64512
    %v56 = vsel %vm54, %v38, 0
    %v59 = vsel %vm54, %v39, 0
    %v62 = vsel %vm54, %v40, 0
    %v65 = vsel %vm54, %v41, 0
    %v68 = vsel %vm54, %v42, 0
    %v71 = vsel %vm54, %v43, 0
    %v74 = vsel %vm54, %v44, 0
    %v77 = vsel %vm54, %v45, 0
    %79 = vmatprep.subr.mxu0 0.0
    %80 = vmatpush1.msra.mxu0 0.0
    %81 = vmatprep.subr.mxu0 0.0
    %82 = vmatpush1.msra.mxu0 0.0
    %83 = vmatprep.subr.mxu0 0.0
    %84 = vmatpush1.msra.mxu0 0.0
    %85 = vmatprep.subr.mxu0 0.0
    %86 = vmatpush1.msra.mxu0 0.0
    %87 = vmatprep.subr.mxu0 0.0
    %88 = vmatpush1.msra.mxu0 0.0
    %89 = vmatprep.subr.mxu0 0.0
    %90 = vmatpush1.msra.mxu0 0.0
    %91 = vmatprep.subr.mxu0 0.0
    %92 = vmatpush1.msra.mxu0 0.0
    %93 = vmatprep.subr.mxu0 0.0
    %94 = vmatpush1.msra.mxu0 0.0
    %95 = vmatprep.subr.mxu0 0.0
    %96 = vmatpush1.msra.mxu0 0.0
    %97 = vmatprep.subr.mxu0 0.0
    %98 = vmatpush1.msra.mxu0 0.0
    %99 = vmatprep.subr.mxu0 0.0
    %100 = vmatpush1.msra.mxu0 0.0
    %101 = vmatprep.subr.mxu0 0.0
    %102 = vmatpush1.msra.mxu0 0.0
    %103 = vmatprep.subr.mxu0 0.0
    %104 = vmatpush1.msra.mxu0 0.0
    %105 = vmatprep.subr.mxu0 0.0
    %106 = vmatpush1.msra.mxu0 0.0
    %107 = vmatprep.subr.mxu0 0.0
    %108 = vmatpush1.msra.mxu0 0.0
    %109 = vmatprep.subr.mxu0 0.0
    %110 = vmatpush1.msra.mxu0 %v46
    %111 = vmatprep.subr.mxu0 0.0
    %112 = vmatpush2.msra.mxu0 0.0
    %113 = vmatprep.subr.mxu0 0.0
    %114 = vmatpush2.msra.mxu0 0.0
    %115 = vmatprep.subr.mxu0 0.0
    %116 = vmatpush2.msra.mxu0 0.0
    %117 = vmatprep.subr.mxu0 0.0
    %118 = vmatpush2.msra.mxu0 0.0
    %119 = vmatprep.subr.mxu0 0.0
    %120 = vmatpush2.msra.mxu0 0.0
    %121 = vmatprep.subr.mxu0 0.0
    %122 = vmatpush2.msra.mxu0 0.0
    %123 = vmatprep.subr.mxu0 0.0
    %124 = vmatpush2.msra.mxu0 0.0
    %125 = vmatprep.subr.mxu0 0.0
    %126 = vmatpush2.msra.mxu0 0.0
    %127 = vmatprep.subr.mxu0 0.0
    %128 = vmatpush2.msra.mxu0 0.0
    %129 = vmatprep.subr.mxu0 0.0
    %130 = vmatpush2.msra.mxu0 0.0
    %131 = vmatprep.subr.mxu0 0.0
    %132 = vmatpush2.msra.mxu0 0.0
    %133 = vmatprep.subr.mxu0 0.0
    %134 = vmatpush2.msra.mxu0 0.0
    %135 = vmatprep.subr.mxu0 0.0
    %136 = vmatpush2.msra.mxu0 0.0
    %137 = vmatprep.subr.mxu0 0.0
    %138 = vmatpush2.msra.mxu0 0.0
    %139 = vmatprep.subr.mxu0 0.0
    %140 = vmatpush2.msra.mxu0 0.0
    %141 = vmatprep.subr.mxu0 0.0
    %142 = vmatpush2.msra.mxu0 0.0
    %143 = vmatprep.mubr.f32.mxu0 0.0
    %144 = vmatmul.mubr.f32.gmra.mxu0 %v56
    %v145 = vpop.f32.mrf.mxu0
    %v146 = vadd.f32 %v52, %v145
    %v147 = vpop.f32.mrf.mxu0
    %148 = vmatprep.mubr.f32.mxu0 0.0
    %149 = vmatmul.mubr.f32.gmra.mxu0 %v59
    %v150 = vpop.f32.mrf.mxu0
    %v151 = vadd.f32 %v52, %v150
    %v152 = vpop.f32.mrf.mxu0
    %153 = vmatprep.mubr.f32.mxu0 0.0
    %154 = vmatmul.mubr.f32.gmra.mxu0 %v62
    %v155 = vpop.f32.mrf.mxu0
    %v156 = vadd.f32 %v52, %v155
    %v157 = vpop.f32.mrf.mxu0
    %158 = vmatprep.mubr.f32.mxu0 0.0
    %159 = vmatmul.mubr.f32.gmra.mxu0 %v65
    %v160 = vpop.f32.mrf.mxu0
    %v161 = vadd.f32 %v52, %v160
    %v162 = vpop.f32.mrf.mxu0
    %163 = vmatprep.mubr.f32.mxu0 0.0
    %164 = vmatmul.mubr.f32.gmra.mxu0 %v68
    %v165 = vpop.f32.mrf.mxu0
    %v166 = vadd.f32 %v52, %v165
    %v167 = vpop.f32.mrf.mxu0
    %168 = vmatprep.mubr.f32.mxu0 0.0
    %169 = vmatmul.mubr.f32.gmra.mxu0 %v71
    %v170 = vpop.f32.mrf.mxu0
    %v171 = vadd.f32 %v52, %v170
    %v172 = vpop.f32.mrf.mxu0
    %173 = vmatprep.mubr.f32.mxu0 0.0
    %174 = vmatmul.mubr.f32.gmra.mxu0 %v74
    %v175 = vpop.f32.mrf.mxu0
    %v176 = vadd.f32 %v52, %v175
    %v177 = vpop.f32.mrf.mxu0
    %178 = vmatprep.mubr.f32.mxu0 0.0
    %179 = vmatmul.mubr.f32.gmra.mxu0 %v77
    %v180 = vpop.f32.mrf.mxu0
    %v181 = vadd.f32 %v52, %v180
    %v182 = vpop.f32.mrf.mxu0
    %183 = vdwg.mxu0
    %v184 = vld [vmem:[%s1] sm:$0xff]
    %v185 = vld [vmem:[%s1 + $0x8] sm:$0xff]
    %v186 = vld [vmem:[%s1 + $0x10] sm:$0xff]
    %v187 = vld [vmem:[%s1 + $0x18] sm:$0xff]
    %v188 = vld [vmem:[%s1 + $0x20] sm:$0xff]
    %v189 = vld [vmem:[%s1 + $0x28] sm:$0xff]
    %v190 = vld [vmem:[%s1 + $0x30] sm:$0xff]
    %v191 = vld [vmem:[%s1 + $0x38] sm:$0xff]
    %v192 = vadd.f32 %v146, %v184
    %v193 = vadd.f32 %v151, %v185
    %v194 = vadd.f32 %v156, %v186
    %v195 = vadd.f32 %v161, %v187
    %v196 = vadd.f32 %v166, %v188
    %v197 = vadd.f32 %v171, %v189
    %v198 = vadd.f32 %v176, %v190
    %v199 = vadd.f32 %v181, %v191
    %200 = vst [vmem:[#allocation5] sm:$0xff] %v192
    %201 = vst [vmem:[#allocation5 + $0x8] sm:$0xff] %v193
    %202 = vst [vmem:[#allocation5 + $0x10] sm:$0xff] %v194
    %203 = vst [vmem:[#allocation5 + $0x18] sm:$0xff] %v195
    %204 = vst [vmem:[#allocation5 + $0x20] sm:$0xff] %v196
    %205 = vst [vmem:[#allocation5 + $0x28] sm:$0xff] %v197
    %206 = vst [vmem:[#allocation5 + $0x30] sm:$0xff] %v198
    %207 = vst [vmem:[#allocation5 + $0x38] sm:$0xff] %v199
    %v208 = vld [vmem:[#allocation2] sm:$0xff]
    %v209 = vld [vmem:[#allocation2 + $0x8] sm:$0xff]
    %v210 = vld [vmem:[#allocation2 + $0x10] sm:$0xff]
    %v211 = vld [vmem:[#allocation2 + $0x18] sm:$0xff]
    %v212 = vld [vmem:[#allocation2 + $0x20] sm:$0xff]
    %v213 = vld [vmem:[#allocation2 + $0x28] sm:$0xff]
    %v214 = vld [vmem:[#allocation2 + $0x30] sm:$0xff]
    %v215 = vld [vmem:[#allocation2 + $0x38] sm:$0xff]
    %v216 = vld [vmem:[#allocation2 + $0x40] sm:$0xff]
    %v217 = vld [vmem:[#allocation2 + $0x48] sm:$0xff]
    %v218 = vld [vmem:[#allocation2 + $0x50] sm:$0xff]
    %v219 = vld [vmem:[#allocation2 + $0x58] sm:$0xff]
    %v220 = vld [vmem:[#allocation2 + $0x60] sm:$0xff]
    %v221 = vld [vmem:[#allocation2 + $0x68] sm:$0xff]
    %v222 = vld [vmem:[#allocation2 + $0x70] sm:$0xff]
    %v223 = vld [vmem:[#allocation2 + $0x78] sm:$0xff]
    %v224 = vld [vmem:[%s5] sm:$0xff]
    %v225 = vmax.f32 %v224, 0.0
    %v226 = vld [vmem:[#allocation5] sm:$0xff]
    %227 = vmatprep.subr.mxu0 0.0
    %228 = vmatpush1.msra.mxu0 %v223
    %229 = vmatprep.subr.mxu0 0.0
    %230 = vmatpush1.msra.mxu0 %v222
    %231 = vmatprep.subr.mxu0 0.0
    %232 = vmatpush1.msra.mxu0 %v221
    %233 = vmatprep.subr.mxu0 0.0
    %234 = vmatpush1.msra.mxu0 %v220
    %235 = vmatprep.subr.mxu0 0.0
    %236 = vmatpush1.msra.mxu0 %v219
    %237 = vmatprep.subr.mxu0 0.0
    %238 = vmatpush1.msra.mxu0 %v218
    %239 = vmatprep.subr.mxu0 0.0
    %240 = vmatpush1.msra.mxu0 %v217
    %241 = vmatprep.subr.mxu0 0.0
    %242 = vmatpush1.msra.mxu0 %v216
    %243 = vmatprep.subr.mxu0 0.0
    %244 = vmatpush1.msra.mxu0 %v215
    %245 = vmatprep.subr.mxu0 0.0
    %246 = vmatpush1.msra.mxu0 %v214
    %247 = vmatprep.subr.mxu0 0.0
    %248 = vmatpush1.msra.mxu0 %v213
    %249 = vmatprep.subr.mxu0 0.0
    %250 = vmatpush1.msra.mxu0 %v212
    %251 = vmatprep.subr.mxu0 0.0
    %252 = vmatpush1.msra.mxu0 %v211
    %253 = vmatprep.subr.mxu0 0.0
    %254 = vmatpush1.msra.mxu0 %v210
    %255 = vmatprep.subr.mxu0 0.0
    %256 = vmatpush1.msra.mxu0 %v209
    %257 = vmatprep.subr.mxu0 0.0
    %258 = vmatpush1.msra.mxu0 %v208
    %259 = vmatprep.subr.mxu0 0.0
    %260 = vmatpush2.msra.mxu0 0.0
    %261 = vmatprep.subr.mxu0 0.0
    %262 = vmatpush2.msra.mxu0 0.0
    %263 = vmatprep.subr.mxu0 0.0
    %264 = vmatpush2.msra.mxu0 0.0
    %265 = vmatprep.subr.mxu0 0.0
    %266 = vmatpush2.msra.mxu0 0.0
    %267 = vmatprep.subr.mxu0 0.0
    %268 = vmatpush2.msra.mxu0 0.0
    %269 = vmatprep.subr.mxu0 0.0
    %270 = vmatpush2.msra.mxu0 0.0
    %271 = vmatprep.subr.mxu0 0.0
    %272 = vmatpush2.msra.mxu0 0.0
    %273 = vmatprep.subr.mxu0 0.0
    %274 = vmatpush2.msra.mxu0 0.0
    %275 = vmatprep.subr.mxu0 0.0
    %276 = vmatpush2.msra.mxu0 0.0
    %277 = vmatprep.subr.mxu0 0.0
    %278 = vmatpush2.msra.mxu0 0.0
    %279 = vmatprep.subr.mxu0 0.0
    %280 = vmatpush2.msra.mxu0 0.0
    %281 = vmatprep.subr.mxu0 0.0
    %282 = vmatpush2.msra.mxu0 0.0
    %283 = vmatprep.subr.mxu0 0.0
    %284 = vmatpush2.msra.mxu0 0.0
    %285 = vmatprep.subr.mxu0 0.0
    %286 = vmatpush2.msra.mxu0 0.0
    %287 = vmatprep.subr.mxu0 0.0
    %288 = vmatpush2.msra.mxu0 0.0
    %289 = vmatprep.subr.mxu0 0.0
    %290 = vmatpush2.msra.mxu0 0.0
    %291 = vmatprep.mubr.f32.mxu0 0.0
    %292 = vmatmul.mubr.f32.gmra.mxu0 %v225
    %v293 = vpop.f32.mrf.mxu0
    %v294 = vadd.f32 %v226, %v293
    %v295 = vpop.f32.mrf.mxu0
    %296 = vdwg.mxu0
    %v297 = vmul.f32 %v224, 0.8
    %v298 = vmul.f32 %v294, 0.2
    %v299 = vadd.f32 %v297, %v298
    %300 = vst [vmem:[#allocation5] sm:$0xff] %v299
    %v301 = vmax.f32 %v299, 0.0
    %s302 = scalar_lea.vmem [#allocation5], 8
    %v303 = vld [vmem:[%s302] sm:$0xff]
    %304 = vmatprep.subr.mxu0 0.0
    %305 = vmatpush1.msra.mxu0 %v223
    %306 = vmatprep.subr.mxu0 0.0
    %307 = vmatpush1.msra.mxu0 %v222
    %308 = vmatprep.subr.mxu0 0.0
    %309 = vmatpush1.msra.mxu0 %v221
    %310 = vmatprep.subr.mxu0 0.0
    %311 = vmatpush1.msra.mxu0 %v220
    %312 = vmatprep.subr.mxu0 0.0
    %313 = vmatpush1.msra.mxu0 %v219
    %314 = vmatprep.subr.mxu0 0.0
    %315 = vmatpush1.msra.mxu0 %v218
    %316 = vmatprep.subr.mxu0 0.0
    %317 = vmatpush1.msra.mxu0 %v217
    %318 = vmatprep.subr.mxu0 0.0
    %319 = vmatpush1.msra.mxu0 %v216
    %320 = vmatprep.subr.mxu0 0.0
    %321 = vmatpush1.msra.mxu0 %v215
    %322 = vmatprep.subr.mxu0 0.0
    %323 = vmatpush1.msra.mxu0 %v214
    %324 = vmatprep.subr.mxu0 0.0
    %325 = vmatpush1.msra.mxu0 %v213
    %326 = vmatprep.subr.mxu0 0.0
    %327 = vmatpush1.msra.mxu0 %v212
    %328 = vmatprep.subr.mxu0 0.0
    %329 = vmatpush1.msra.mxu0 %v211
    %330 = vmatprep.subr.mxu0 0.0
    %331 = vmatpush1.msra.mxu0 %v210
    %332 = vmatprep.subr.mxu0 0.0
    %333 = vmatpush1.msra.mxu0 %v209
    %334 = vmatprep.subr.mxu0 0.0
    %335 = vmatpush1.msra.mxu0 %v208
    %336 = vmatprep.subr.mxu0 0.0
    %337 = vmatpush2.msra.mxu0 0.0
    %338 = vmatprep.subr.mxu0 0.0
    %339 = vmatpush2.msra.mxu0 0.0
    %340 = vmatprep.subr.mxu0 0.0
    %341 = vmatpush2.msra.mxu0 0.0
    %342 = vmatprep.subr.mxu0 0.0
    %343 = vmatpush2.msra.mxu0 0.0
    %344 = vmatprep.subr.mxu0 0.0
    %345 = vmatpush2.msra.mxu0 0.0
    %346 = vmatprep.subr.mxu0 0.0
    %347 = vmatpush2.msra.mxu0 0.0
    %348 = vmatprep.subr.mxu0 0.0
    %349 = vmatpush2.msra.mxu0 0.0
    %350 = vmatprep.subr.mxu0 0.0
    %351 = vmatpush2.msra.mxu0 0.0
    %352 = vmatprep.subr.mxu0 0.0
    %353 = vmatpush2.msra.mxu0 0.0
    %354 = vmatprep.subr.mxu0 0.0
    %355 = vmatpush2.msra.mxu0 0.0
    %356 = vmatprep.subr.mxu0 0.0
    %357 = vmatpush2.msra.mxu0 0.0
    %358 = vmatprep.subr.mxu0 0.0
    %359 = vmatpush2.msra.mxu0 0.0
    %360 = vmatprep.subr.mxu0 0.0
    %361 = vmatpush2.msra.mxu0 0.0
    %362 = vmatprep.subr.mxu0 0.0
    %363 = vmatpush2.msra.mxu0 0.0
    %364 = vmatprep.subr.mxu0 0.0
    %365 = vmatpush2.msra.mxu0 0.0
    %366 = vmatprep.subr.mxu0 0.0
    %367 = vmatpush2.msra.mxu0 0.0
    %368 = vmatprep.mubr.f32.mxu0 0.0
    %369 = vmatmul.mubr.f32.gmra.mxu0 %v301
    %v370 = vpop.f32.mrf.mxu0
    %v371 = vadd.f32 %v303, %v370
    %v372 = vpop.f32.mrf.mxu0
    %373 = vdwg.mxu0
    %v374 = vmul.f32 %v299, 0.8
    %v375 = vmul.f32 %v371, 0.2
    %v376 = vadd.f32 %v374, %v375
    %377 = vst [vmem:[%s302] sm:$0xff] %v376
    %v378 = vmax.f32 %v376, 0.0
    %s379 = scalar_lea.vmem [#allocation5], 16
    %v380 = vld [vmem:[%s379] sm:$0xff]
    %381 = vmatprep.subr.mxu0 0.0
    %382 = vmatpush1.msra.mxu0 %v223
    %383 = vmatprep.subr.mxu0 0.0
    %384 = vmatpush1.msra.mxu0 %v222
    %385 = vmatprep.subr.mxu0 0.0
    %386 = vmatpush1.msra.mxu0 %v221
    %387 = vmatprep.subr.mxu0 0.0
    %388 = vmatpush1.msra.mxu0 %v220
    %389 = vmatprep.subr.mxu0 0.0
    %390 = vmatpush1.msra.mxu0 %v219
    %391 = vmatprep.subr.mxu0 0.0
    %392 = vmatpush1.msra.mxu0 %v218
    %393 = vmatprep.subr.mxu0 0.0
    %394 = vmatpush1.msra.mxu0 %v217
    %395 = vmatprep.subr.mxu0 0.0
    %396 = vmatpush1.msra.mxu0 %v216
    %397 = vmatprep.subr.mxu0 0.0
    %398 = vmatpush1.msra.mxu0 %v215
    %399 = vmatprep.subr.mxu0 0.0
    %400 = vmatpush1.msra.mxu0 %v214
    %401 = vmatprep.subr.mxu0 0.0
    %402 = vmatpush1.msra.mxu0 %v213
    %403 = vmatprep.subr.mxu0 0.0
    %404 = vmatpush1.msra.mxu0 %v212
    %405 = vmatprep.subr.mxu0 0.0
    %406 = vmatpush1.msra.mxu0 %v211
    %407 = vmatprep.subr.mxu0 0.0
    %408 = vmatpush1.msra.mxu0 %v210
    %409 = vmatprep.subr.mxu0 0.0
    %410 = vmatpush1.msra.mxu0 %v209
    %411 = vmatprep.subr.mxu0 0.0
    %412 = vmatpush1.msra.mxu0 %v208
    %413 = vmatprep.subr.mxu0 0.0
    %414 = vmatpush2.msra.mxu0 0.0
    %415 = vmatprep.subr.mxu0 0.0
    %416 = vmatpush2.msra.mxu0 0.0
    %417 = vmatprep.subr.mxu0 0.0
    %418 = vmatpush2.msra.mxu0 0.0
    %419 = vmatprep.subr.mxu0 0.0
    %420 = vmatpush2.msra.mxu0 0.0
    %421 = vmatprep.subr.mxu0 0.0
    %422 = vmatpush2.msra.mxu0 0.0
    %423 = vmatprep.subr.mxu0 0.0
    %424 = vmatpush2.msra.mxu0 0.0
    %425 = vmatprep.subr.mxu0 0.0
    %426 = vmatpush2.msra.mxu0 0.0
    %427 = vmatprep.subr.mxu0 0.0
    %428 = vmatpush2.msra.mxu0 0.0
    %429 = vmatprep.subr.mxu0 0.0
    %430 = vmatpush2.msra.mxu0 0.0
    %431 = vmatprep.subr.mxu0 0.0
    %432 = vmatpush2.msra.mxu0 0.0
    %433 = vmatprep.subr.mxu0 0.0
    %434 = vmatpush2.msra.mxu0 0.0
    %435 = vmatprep.subr.mxu0 0.0
    %436 = vmatpush2.msra.mxu0 0.0
    %437 = vmatprep.subr.mxu0 0.0
    %438 = vmatpush2.msra.mxu0 0.0
    %439 = vmatprep.subr.mxu0 0.0
    %440 = vmatpush2.msra.mxu0 0.0
    %441 = vmatprep.subr.mxu0 0.0
    %442 = vmatpush2.msra.mxu0 0.0
    %443 = vmatprep.subr.mxu0 0.0
    %444 = vmatpush2.msra.mxu0 0.0
    %445 = vmatprep.mubr.f32.mxu0 0.0
    %446 = vmatmul.mubr.f32.gmra.mxu0 %v378
    %v447 = vpop.f32.mrf.mxu0
    %v448 = vadd.f32 %v380, %v447
    %v449 = vpop.f32.mrf.mxu0
    %450 = vdwg.mxu0
    %v451 = vmul.f32 %v376, 0.8
    %v452 = vmul.f32 %v448, 0.2
    %v453 = vadd.f32 %v451, %v452
    %454 = vst [vmem:[%s379] sm:$0xff] %v453
    %v455 = vmax.f32 %v453, 0.0
    %s456 = scalar_lea.vmem [#allocation5], 24
    %v457 = vld [vmem:[%s456] sm:$0xff]
    %458 = vmatprep.subr.mxu0 0.0
    %459 = vmatpush1.msra.mxu0 %v223
    %460 = vmatprep.subr.mxu0 0.0
    %461 = vmatpush1.msra.mxu0 %v222
    %462 = vmatprep.subr.mxu0 0.0
    %463 = vmatpush1.msra.mxu0 %v221
    %464 = vmatprep.subr.mxu0 0.0
    %465 = vmatpush1.msra.mxu0 %v220
    %466 = vmatprep.subr.mxu0 0.0
    %467 = vmatpush1.msra.mxu0 %v219
    %468 = vmatprep.subr.mxu0 0.0
    %469 = vmatpush1.msra.mxu0 %v218
    %470 = vmatprep.subr.mxu0 0.0
    %471 = vmatpush1.msra.mxu0 %v217
    %472 = vmatprep.subr.mxu0 0.0
    %473 = vmatpush1.msra.mxu0 %v216
    %474 = vmatprep.subr.mxu0 0.0
    %475 = vmatpush1.msra.mxu0 %v215
    %476 = vmatprep.subr.mxu0 0.0
    %477 = vmatpush1.msra.mxu0 %v214
    %478 = vmatprep.subr.mxu0 0.0
    %479 = vmatpush1.msra.mxu0 %v213
    %480 = vmatprep.subr.mxu0 0.0
    %481 = vmatpush1.msra.mxu0 %v212
    %482 = vmatprep.subr.mxu0 0.0
    %483 = vmatpush1.msra.mxu0 %v211
    %484 = vmatprep.subr.mxu0 0.0
    %485 = vmatpush1.msra.mxu0 %v210
    %486 = vmatprep.subr.mxu0 0.0
    %487 = vmatpush1.msra.mxu0 %v209
    %488 = vmatprep.subr.mxu0 0.0
    %489 = vmatpush1.msra.mxu0 %v208
    %490 = vmatprep.subr.mxu0 0.0
    %491 = vmatpush2.msra.mxu0 0.0
    %492 = vmatprep.subr.mxu0 0.0
    %493 = vmatpush2.msra.mxu0 0.0
    %494 = vmatprep.subr.mxu0 0.0
    %495 = vmatpush2.msra.mxu0 0.0
    %496 = vmatprep.subr.mxu0 0.0
    %497 = vmatpush2.msra.mxu0 0.0
    %498 = vmatprep.subr.mxu0 0.0
    %499 = vmatpush2.msra.mxu0 0.0
    %500 = vmatprep.subr.mxu0 0.0
    %501 = vmatpush2.msra.mxu0 0.0
    %502 = vmatprep.subr.mxu0 0.0
    %503 = vmatpush2.msra.mxu0 0.0
    %504 = vmatprep.subr.mxu0 0.0
    %505 = vmatpush2.msra.mxu0 0.0
    %506 = vmatprep.subr.mxu0 0.0
    %507 = vmatpush2.msra.mxu0 0.0
    %508 = vmatprep.subr.mxu0 0.0
    %509 = vmatpush2.msra.mxu0 0.0
    %510 = vmatprep.subr.mxu0 0.0
    %511 = vmatpush2.msra.mxu0 0.0
    %512 = vmatprep.subr.mxu0 0.0
    %513 = vmatpush2.msra.mxu0 0.0
    %514 = vmatprep.subr.mxu0 0.0
    %515 = vmatpush2.msra.mxu0 0.0
    %516 = vmatprep.subr.mxu0 0.0
    %517 = vmatpush2.msra.mxu0 0.0
    %518 = vmatprep.subr.mxu0 0.0
    %519 = vmatpush2.msra.mxu0 0.0
    %520 = vmatprep.subr.mxu0 0.0
    %521 = vmatpush2.msra.mxu0 0.0
    %522 = vmatprep.mubr.f32.mxu0 0.0
    %523 = vmatmul.mubr.f32.gmra.mxu0 %v455
    %v524 = vpop.f32.mrf.mxu0
    %v525 = vadd.f32 %v457, %v524
    %v526 = vpop.f32.mrf.mxu0
    %527 = vdwg.mxu0
    %v528 = vmul.f32 %v453, 0.8
    %v529 = vmul.f32 %v525, 0.2
    %v530 = vadd.f32 %v528, %v529
    %531 = vst [vmem:[%s456] sm:$0xff] %v530
    %v532 = vmax.f32 %v530, 0.0
    %s533 = scalar_lea.vmem [#allocation5], 32
    %v534 = vld [vmem:[%s533] sm:$0xff]
    %535 = vmatprep.subr.mxu0 0.0
    %536 = vmatpush1.msra.mxu0 %v223
    %537 = vmatprep.subr.mxu0 0.0
    %538 = vmatpush1.msra.mxu0 %v222
    %539 = vmatprep.subr.mxu0 0.0
    %540 = vmatpush1.msra.mxu0 %v221
    %541 = vmatprep.subr.mxu0 0.0
    %542 = vmatpush1.msra.mxu0 %v220
    %543 = vmatprep.subr.mxu0 0.0
    %544 = vmatpush1.msra.mxu0 %v219
    %545 = vmatprep.subr.mxu0 0.0
    %546 = vmatpush1.msra.mxu0 %v218
    %547 = vmatprep.subr.mxu0 0.0
    %548 = vmatpush1.msra.mxu0 %v217
    %549 = vmatprep.subr.mxu0 0.0
    %550 = vmatpush1.msra.mxu0 %v216
    %551 = vmatprep.subr.mxu0 0.0
    %552 = vmatpush1.msra.mxu0 %v215
    %553 = vmatprep.subr.mxu0 0.0
    %554 = vmatpush1.msra.mxu0 %v214
    %555 = vmatprep.subr.mxu0 0.0
    %556 = vmatpush1.msra.mxu0 %v213
    %557 = vmatprep.subr.mxu0 0.0
    %558 = vmatpush1.msra.mxu0 %v212
    %559 = vmatprep.subr.mxu0 0.0
    %560 = vmatpush1.msra.mxu0 %v211
    %561 = vmatprep.subr.mxu0 0.0
    %562 = vmatpush1.msra.mxu0 %v210
    %563 = vmatprep.subr.mxu0 0.0
    %564 = vmatpush1.msra.mxu0 %v209
    %565 = vmatprep.subr.mxu0 0.0
    %566 = vmatpush1.msra.mxu0 %v208
    %567 = vmatprep.subr.mxu0 0.0
    %568 = vmatpush2.msra.mxu0 0.0
    %569 = vmatprep.subr.mxu0 0.0
    %570 = vmatpush2.msra.mxu0 0.0
    %571 = vmatprep.subr.mxu0 0.0
    %572 = vmatpush2.msra.mxu0 0.0
    %573 = vmatprep.subr.mxu0 0.0
    %574 = vmatpush2.msra.mxu0 0.0
    %575 = vmatprep.subr.mxu0 0.0
    %576 = vmatpush2.msra.mxu0 0.0
    %577 = vmatprep.subr.mxu0 0.0
    %578 = vmatpush2.msra.mxu0 0.0
    %579 = vmatprep.subr.mxu0 0.0
    %580 = vmatpush2.msra.mxu0 0.0
    %581 = vmatprep.subr.mxu0 0.0
    %582 = vmatpush2.msra.mxu0 0.0
    %583 = vmatprep.subr.mxu0 0.0
    %584 = vmatpush2.msra.mxu0 0.0
    %585 = vmatprep.subr.mxu0 0.0
    %586 = vmatpush2.msra.mxu0 0.0
    %587 = vmatprep.subr.mxu0 0.0
    %588 = vmatpush2.msra.mxu0 0.0
    %589 = vmatprep.subr.mxu0 0.0
    %590 = vmatpush2.msra.mxu0 0.0
    %591 = vmatprep.subr.mxu0 0.0
    %592 = vmatpush2.msra.mxu0 0.0
    %593 = vmatprep.subr.mxu0 0.0
    %594 = vmatpush2.msra.mxu0 0.0
    %595 = vmatprep.subr.mxu0 0.0
    %596 = vmatpush2.msra.mxu0 0.0
    %597 = vmatprep.subr.mxu0 0.0
    %598 = vmatpush2.msra.mxu0 0.0
    %599 = vmatprep.mubr.f32.mxu0 0.0
    %600 = vmatmul.mubr.f32.gmra.mxu0 %v532
    %v601 = vpop.f32.mrf.mxu0
    %v602 = vadd.f32 %v534, %v601
    %v603 = vpop.f32.mrf.mxu0
    %604 = vdwg.mxu0
    %v605 = vmul.f32 %v530, 0.8
    %v606 = vmul.f32 %v602, 0.2
    %v607 = vadd.f32 %v605, %v606
    %608 = vst [vmem:[%s533] sm:$0xff] %v607
    %v609 = vmax.f32 %v607, 0.0
    %s610 = scalar_lea.vmem [#allocation5], 40
    %v611 = vld [vmem:[%s610] sm:$0xff]
    %612 = vmatprep.subr.mxu0 0.0
    %613 = vmatpush1.msra.mxu0 %v223
    %614 = vmatprep.subr.mxu0 0.0
    %615 = vmatpush1.msra.mxu0 %v222
    %616 = vmatprep.subr.mxu0 0.0
    %617 = vmatpush1.msra.mxu0 %v221
    %618 = vmatprep.subr.mxu0 0.0
    %619 = vmatpush1.msra.mxu0 %v220
    %620 = vmatprep.subr.mxu0 0.0
    %621 = vmatpush1.msra.mxu0 %v219
    %622 = vmatprep.subr.mxu0 0.0
    %623 = vmatpush1.msra.mxu0 %v218
    %624 = vmatprep.subr.mxu0 0.0
    %625 = vmatpush1.msra.mxu0 %v217
    %626 = vmatprep.subr.mxu0 0.0
    %627 = vmatpush1.msra.mxu0 %v216
    %628 = vmatprep.subr.mxu0 0.0
    %629 = vmatpush1.msra.mxu0 %v215
    %630 = vmatprep.subr.mxu0 0.0
    %631 = vmatpush1.msra.mxu0 %v214
    %632 = vmatprep.subr.mxu0 0.0
    %633 = vmatpush1.msra.mxu0 %v213
    %634 = vmatprep.subr.mxu0 0.0
    %635 = vmatpush1.msra.mxu0 %v212
    %636 = vmatprep.subr.mxu0 0.0
    %637 = vmatpush1.msra.mxu0 %v211
    %638 = vmatprep.subr.mxu0 0.0
    %639 = vmatpush1.msra.mxu0 %v210
    %640 = vmatprep.subr.mxu0 0.0
    %641 = vmatpush1.msra.mxu0 %v209
    %642 = vmatprep.subr.mxu0 0.0
    %643 = vmatpush1.msra.mxu0 %v208
    %644 = vmatprep.subr.mxu0 0.0
    %645 = vmatpush2.msra.mxu0 0.0
    %646 = vmatprep.subr.mxu0 0.0
    %647 = vmatpush2.msra.mxu0 0.0
    %648 = vmatprep.subr.mxu0 0.0
    %649 = vmatpush2.msra.mxu0 0.0
    %650 = vmatprep.subr.mxu0 0.0
    %651 = vmatpush2.msra.mxu0 0.0
    %652 = vmatprep.subr.mxu0 0.0
    %653 = vmatpush2.msra.mxu0 0.0
    %654 = vmatprep.subr.mxu0 0.0
    %655 = vmatpush2.msra.mxu0 0.0
    %656 = vmatprep.subr.mxu0 0.0
    %657 = vmatpush2.msra.mxu0 0.0
    %658 = vmatprep.subr.mxu0 0.0
    %659 = vmatpush2.msra.mxu0 0.0
    %660 = vmatprep.subr.mxu0 0.0
    %661 = vmatpush2.msra.mxu0 0.0
    %662 = vmatprep.subr.mxu0 0.0
    %663 = vmatpush2.msra.mxu0 0.0
    %664 = vmatprep.subr.mxu0 0.0
    %665 = vmatpush2.msra.mxu0 0.0
    %666 = vmatprep.subr.mxu0 0.0
    %667 = vmatpush2.msra.mxu0 0.0
    %668 = vmatprep.subr.mxu0 0.0
    %669 = vmatpush2.msra.mxu0 0.0
    %670 = vmatprep.subr.mxu0 0.0
    %671 = vmatpush2.msra.mxu0 0.0
    %672 = vmatprep.subr.mxu0 0.0
    %673 = vmatpush2.msra.mxu0 0.0
    %674 = vmatprep.subr.mxu0 0.0
    %675 = vmatpush2.msra.mxu0 0.0
    %676 = vmatprep.mubr.f32.mxu0 0.0
    %677 = vmatmul.mubr.f32.gmra.mxu0 %v609
    %v678 = vpop.f32.mrf.mxu0
    %v679 = vadd.f32 %v611, %v678
    %v680 = vpop.f32.mrf.mxu0
    %681 = vdwg.mxu0
    %v682 = vmul.f32 %v607, 0.8
    %v683 = vmul.f32 %v679, 0.2
    %v684 = vadd.f32 %v682, %v683
    %685 = vst [vmem:[%s610] sm:$0xff] %v684
    %v686 = vmax.f32 %v684, 0.0
    %s687 = scalar_lea.vmem [#allocation5], 48
    %v688 = vld [vmem:[%s687] sm:$0xff]
    %689 = vmatprep.subr.mxu0 0.0
    %690 = vmatpush1.msra.mxu0 %v223
    %691 = vmatprep.subr.mxu0 0.0
    %692 = vmatpush1.msra.mxu0 %v222
    %693 = vmatprep.subr.mxu0 0.0
    %694 = vmatpush1.msra.mxu0 %v221
    %695 = vmatprep.subr.mxu0 0.0
    %696 = vmatpush1.msra.mxu0 %v220
    %697 = vmatprep.subr.mxu0 0.0
    %698 = vmatpush1.msra.mxu0 %v219
    %699 = vmatprep.subr.mxu0 0.0
    %700 = vmatpush1.msra.mxu0 %v218
    %701 = vmatprep.subr.mxu0 0.0
    %702 = vmatpush1.msra.mxu0 %v217
    %703 = vmatprep.subr.mxu0 0.0
    %704 = vmatpush1.msra.mxu0 %v216
    %705 = vmatprep.subr.mxu0 0.0
    %706 = vmatpush1.msra.mxu0 %v215
    %707 = vmatprep.subr.mxu0 0.0
    %708 = vmatpush1.msra.mxu0 %v214
    %709 = vmatprep.subr.mxu0 0.0
    %710 = vmatpush1.msra.mxu0 %v213
    %711 = vmatprep.subr.mxu0 0.0
    %712 = vmatpush1.msra.mxu0 %v212
    %713 = vmatprep.subr.mxu0 0.0
    %714 = vmatpush1.msra.mxu0 %v211
    %715 = vmatprep.subr.mxu0 0.0
    %716 = vmatpush1.msra.mxu0 %v210
    %717 = vmatprep.subr.mxu0 0.0
    %718 = vmatpush1.msra.mxu0 %v209
    %719 = vmatprep.subr.mxu0 0.0
    %720 = vmatpush1.msra.mxu0 %v208
    %721 = vmatprep.subr.mxu0 0.0
    %722 = vmatpush2.msra.mxu0 0.0
    %723 = vmatprep.subr.mxu0 0.0
    %724 = vmatpush2.msra.mxu0 0.0
    %725 = vmatprep.subr.mxu0 0.0
    %726 = vmatpush2.msra.mxu0 0.0
    %727 = vmatprep.subr.mxu0 0.0
    %728 = vmatpush2.msra.mxu0 0.0
    %729 = vmatprep.subr.mxu0 0.0
    %730 = vmatpush2.msra.mxu0 0.0
    %731 = vmatprep.subr.mxu0 0.0
    %732 = vmatpush2.msra.mxu0 0.0
    %733 = vmatprep.subr.mxu0 0.0
    %734 = vmatpush2.msra.mxu0 0.0
    %735 = vmatprep.subr.mxu0 0.0
    %736 = vmatpush2.msra.mxu0 0.0
    %737 = vmatprep.subr.mxu0 0.0
    %738 = vmatpush2.msra.mxu0 0.0
    %739 = vmatprep.subr.mxu0 0.0
    %740 = vmatpush2.msra.mxu0 0.0
    %741 = vmatprep.subr.mxu0 0.0
    %742 = vmatpush2.msra.mxu0 0.0
    %743 = vmatprep.subr.mxu0 0.0
    %744 = vmatpush2.msra.mxu0 0.0
    %745 = vmatprep.subr.mxu0 0.0
    %746 = vmatpush2.msra.mxu0 0.0
    %747 = vmatprep.subr.mxu0 0.0
    %748 = vmatpush2.msra.mxu0 0.0
    %749 = vmatprep.subr.mxu0 0.0
    %750 = vmatpush2.msra.mxu0 0.0
    %751 = vmatprep.subr.mxu0 0.0
    %752 = vmatpush2.msra.mxu0 0.0
    %753 = vmatprep.mubr.f32.mxu0 0.0
    %754 = vmatmul.mubr.f32.gmra.mxu0 %v686
    %v755 = vpop.f32.mrf.mxu0
    %v756 = vadd.f32 %v688, %v755
    %v757 = vpop.f32.mrf.mxu0
    %758 = vdwg.mxu0
    %v759 = vmul.f32 %v684, 0.8
    %v760 = vmul.f32 %v756, 0.2
    %v761 = vadd.f32 %v759, %v760
    %762 = vst [vmem:[%s687] sm:$0xff] %v761
    %v763 = vmax.f32 %v761, 0.0
    %s764 = scalar_lea.vmem [#allocation5], 56
    %v765 = vld [vmem:[%s764] sm:$0xff]
    %766 = vmatprep.subr.mxu0 0.0
    %767 = vmatpush1.msra.mxu0 %v223
    %768 = vmatprep.subr.mxu0 0.0
    %769 = vmatpush1.msra.mxu0 %v222
    %770 = vmatprep.subr.mxu0 0.0
    %771 = vmatpush1.msra.mxu0 %v221
    %772 = vmatprep.subr.mxu0 0.0
    %773 = vmatpush1.msra.mxu0 %v220
    %774 = vmatprep.subr.mxu0 0.0
    %775 = vmatpush1.msra.mxu0 %v219
    %776 = vmatprep.subr.mxu0 0.0
    %777 = vmatpush1.msra.mxu0 %v218
    %778 = vmatprep.subr.mxu0 0.0
    %779 = vmatpush1.msra.mxu0 %v217
    %780 = vmatprep.subr.mxu0 0.0
    %781 = vmatpush1.msra.mxu0 %v216
    %782 = vmatprep.subr.mxu0 0.0
    %783 = vmatpush1.msra.mxu0 %v215
    %784 = vmatprep.subr.mxu0 0.0
    %785 = vmatpush1.msra.mxu0 %v214
    %786 = vmatprep.subr.mxu0 0.0
    %787 = vmatpush1.msra.mxu0 %v213
    %788 = vmatprep.subr.mxu0 0.0
    %789 = vmatpush1.msra.mxu0 %v212
    %790 = vmatprep.subr.mxu0 0.0
    %791 = vmatpush1.msra.mxu0 %v211
    %792 = vmatprep.subr.mxu0 0.0
    %793 = vmatpush1.msra.mxu0 %v210
    %794 = vmatprep.subr.mxu0 0.0
    %795 = vmatpush1.msra.mxu0 %v209
    %796 = vmatprep.subr.mxu0 0.0
    %797 = vmatpush1.msra.mxu0 %v208
    %798 = vmatprep.subr.mxu0 0.0
    %799 = vmatpush2.msra.mxu0 0.0
    %800 = vmatprep.subr.mxu0 0.0
    %801 = vmatpush2.msra.mxu0 0.0
    %802 = vmatprep.subr.mxu0 0.0
    %803 = vmatpush2.msra.mxu0 0.0
    %804 = vmatprep.subr.mxu0 0.0
    %805 = vmatpush2.msra.mxu0 0.0
    %806 = vmatprep.subr.mxu0 0.0
    %807 = vmatpush2.msra.mxu0 0.0
    %808 = vmatprep.subr.mxu0 0.0
    %809 = vmatpush2.msra.mxu0 0.0
    %810 = vmatprep.subr.mxu0 0.0
    %811 = vmatpush2.msra.mxu0 0.0
    %812 = vmatprep.subr.mxu0 0.0
    %813 = vmatpush2.msra.mxu0 0.0
    %814 = vmatprep.subr.mxu0 0.0
    %815 = vmatpush2.msra.mxu0 0.0
    %816 = vmatprep.subr.mxu0 0.0
    %817 = vmatpush2.msra.mxu0 0.0
    %818 = vmatprep.subr.mxu0 0.0
    %819 = vmatpush2.msra.mxu0 0.0
    %820 = vmatprep.subr.mxu0 0.0
    %821 = vmatpush2.msra.mxu0 0.0
    %822 = vmatprep.subr.mxu0 0.0
    %823 = vmatpush2.msra.mxu0 0.0
    %824 = vmatprep.subr.mxu0 0.0
    %825 = vmatpush2.msra.mxu0 0.0
    %826 = vmatprep.subr.mxu0 0.0
    %827 = vmatpush2.msra.mxu0 0.0
    %828 = vmatprep.subr.mxu0 0.0
    %829 = vmatpush2.msra.mxu0 0.0
    %830 = vmatprep.mubr.f32.mxu0 0.0
    %831 = vmatmul.mubr.f32.gmra.mxu0 %v763
    %v832 = vpop.f32.mrf.mxu0
    %v833 = vadd.f32 %v765, %v832
    %v834 = vpop.f32.mrf.mxu0
    %835 = vdwg.mxu0
    %v836 = vmul.f32 %v761, 0.8
    %v837 = vmul.f32 %v833, 0.2
    %v838 = vadd.f32 %v836, %v837
    %839 = vst [vmem:[%s764] sm:$0xff] %v838
    // Predicated region
    $region30: #{tpu_custom_call.1} parent=1 // pred_check
      _
    $region31: #{tpu_custom_call.1} parent=1 // pred_check_branch
      %841 = sbr.rel (0) target = $region33
    $region32: #{tpu_custom_call.1} parent=1 // pred_region
      %s843 = ssub.s32 1024, 1024
      %844 = vsyncadd [#allocation4], %s843
      %s845 = sshll.u32 [#allocation5], 4
      %s846 = int_to_ptr.vmem [resolvable:$true] %s845
      %851 = dma.vmem_to_hbm [thread:$0]  %s846, 1024, %s6, [#allocation4], 128, 128, 8
    $region33: #{tpu_custom_call.1} parent=1 // pred_fallthru
      _
    // Predicated region
    $region34: #{tpu_custom_call.1} parent=1 // pred_check
      _
    $region35: #{tpu_custom_call.1} parent=1 // pred_check_branch
      %853 = sbr.rel (0) target = $region37
    $region36: #{tpu_custom_call.1} parent=1 // pred_region
      %854 = dma.done [#allocation4], 1024
    $region37: #{tpu_custom_call.1} parent=1 // pred_fallthru
      _
    %855 = vsyncpa [#allocation3], 1
    %856 = vsyncpa [#allocation4], 1

</llo_original>
